<compile_context>
chip_gen: v7x
topology: tpu7x:2x2x1
jax: 0.10.0
libtpu: 0.0.40
codegen_flags: <defaults>
</compile_context>

<pallas_src>
import jax
import jax.numpy as jnp
from jax.experimental import pallas as pl
from jax.experimental.pallas import tpu as pltpu

_LANES = 128      # vreg lane width
_SUBLANES = 8     # vreg sublane height


def _round_up(n, m):
    return ((n + m - 1) // m) * m


def qnetwork_kernel(x_ref, w1_ref, b1_ref, w2_ref, b2_ref, o_ref):
    # Two MXU matmuls + VPU LeakyReLU on one batch tile, fully VMEM-resident.
    # Both matmul operands are lane-dense (128-wide); only the narrow
    # (tb, a_out) slice of the result is stored back to HBM.
    a_out = o_ref.shape[1]
    x = x_ref[...]                                                   # (tb, S)
    h = jnp.dot(x, w1_ref[...], preferred_element_type=jnp.float32)  # (tb, 128)
    h = h + b1_ref[...]                                              # (1, 128) bcast
    h = jnp.maximum(h, 0.01 * h)                                     # LeakyReLU(0.01)
    y = jnp.dot(h, w2_ref[...], preferred_element_type=jnp.float32)  # (tb, a_pad)
    y = y[:, :a_out] + b2_ref[...]                                   # narrow + bias
    o_ref[...] = y.astype(o_ref.dtype)


def prepare_qnetwork_params(w1, b1, w2, b2):
    """Pad params ONCE (at init / load time). Returns a dict for qnetwork_forward.

    w1: (S, H); b1: (1, H); w2: (H, A); b2: (1, A).
    """
    state_size, hidden = w1.shape
    action_size = w2.shape[1]
    h_pad = _round_up(hidden, _LANES)          # 64  -> 128 (lane-dense MXU operands)
    a_pad = _round_up(action_size, _LANES)     # 4   -> 128 (compute width, VMEM only)
    a_out = _round_up(action_size, _SUBLANES)  # 4   -> 8   (stored/HBM output width)

    w1p = jnp.pad(w1.astype(jnp.float32), ((0, 0), (0, h_pad - hidden)))
    b1p = jnp.pad(b1.astype(jnp.float32), ((0, 0), (0, h_pad - hidden)))
    w2p = jnp.pad(w2.astype(jnp.float32),
                  ((0, h_pad - hidden), (0, a_pad - action_size)))
    b2p = jnp.pad(b2.astype(jnp.float32), ((0, 0), (0, a_out - action_size)))
    return dict(w1p=w1p, b1p=b1p, w2p=w2p, b2p=b2p,
                state_size=state_size, h_pad=h_pad, a_pad=a_pad,
                a_out=a_out, action_size=action_size)


def qnetwork_forward(x, params, *, block_batch=4096, min_pallas_batch=512):
    """Forward pass. x: (B, state_size) f32; params from prepare_qnetwork_params."""
    w1p, b1p, w2p, b2p = params["w1p"], params["b1p"], params["w2p"], params["b2p"]
    state_size = params["state_size"]
    h_pad, a_pad = params["h_pad"], params["a_pad"]
    a_out, action_size = params["a_out"], params["action_size"]
    batch = x.shape[0]

    # ---- small-batch fallback: pallas_call fixed overhead dominates here ----
    if batch < min_pallas_batch:
        h = x @ w1p + b1p
        h = jnp.maximum(h, 0.01 * h)
        y = h @ w2p
        return y[:, :action_size] + b2p[:, :action_size]

    # ---- batch tiling: largest 8-aligned tile <= block_batch, pad the tail ----
    tb = min(block_batch, _round_up(batch, _SUBLANES))
    tb = _round_up(tb, _SUBLANES)
    # v7x: keep >= 2 tiles for large batches so the "parallel" axis shards
    # across both TensorCores (harmless single-TC on v5e/v6e).
    if _round_up(batch, _SUBLANES) <= tb and batch > _SUBLANES:
        tb = _round_up((tb + 1) // 2, _SUBLANES)
    b_padded = _round_up(batch, tb)
    if b_padded != batch:
        x = jnp.pad(x, ((0, b_padded - batch), (0, 0)))
    grid = (b_padded // tb,)

    itemsize = 4  # f32
    cost = pl.CostEstimate(
        flops=2 * b_padded * (state_size * h_pad + h_pad * a_pad),
        transcendentals=0,
        bytes_accessed=itemsize * (b_padded * state_size + b_padded * a_out
                                   + w1p.size + b1p.size + w2p.size + b2p.size),
    )

    out = pl.pallas_call(
        qnetwork_kernel,
        out_shape=jax.ShapeDtypeStruct((b_padded, a_out), jnp.float32),
        grid=grid,
        in_specs=[
            # batch tile of x, streamed/pipelined along the grid
            pl.BlockSpec((tb, state_size), lambda i: (i, 0)),
            # weights/biases: constant block index -> resident in VMEM
            pl.BlockSpec((state_size, h_pad), lambda i: (0, 0)),
            pl.BlockSpec((1, h_pad), lambda i: (0, 0)),
            pl.BlockSpec((h_pad, a_pad), lambda i: (0, 0)),
            pl.BlockSpec((1, a_out), lambda i: (0, 0)),
        ],
        # Narrow stored output (a_out = round_up(action_size, 8)): ~16x less
        # HBM write traffic than a 128-lane-padded output for action_size=4.
        out_specs=pl.BlockSpec((tb, a_out), lambda i: (i, 0)),
        compiler_params=pltpu.CompilerParams(
            dimension_semantics=("parallel",),
        ),
        cost_estimate=cost,
    )(x, w1p, b1p, w2p, b2p)

    # Strip batch-tail and the tiny (<=7 col) output padding.
    if b_padded != batch or a_out != action_size:
        out = out[:batch, :action_size]
    return out


def init_qnetwork_params(key, state_size, action_size, fc1_units=64):
    """Deterministic parameter init mirroring the PyTorch module's __init__."""
    k1, k2, k3, k4 = jax.random.split(key, 4)
    relu_gain = jnp.sqrt(2.0)    # torch.nn.init.calculate_gain('relu')
    linear_gain = 1.0            # torch.nn.init.calculate_gain('linear')

    # TODO(synk): jax orthogonal on the transposed (in,out) shape orthonormalizes
    # the opposite side vs PyTorch's orthogonal_ on (out,in) for non-square layers;
    # init in (out,in) and transpose if exact PyTorch init parity is required.
    w1 = jax.nn.initializers.orthogonal(scale=relu_gain)(
        k1, (state_size, fc1_units), jnp.float32)
    w2 = jax.nn.initializers.orthogonal(scale=linear_gain)(
        k2, (fc1_units, action_size), jnp.float32)

    # PyTorch Linear bias default: U(-1/sqrt(fan_in), 1/sqrt(fan_in)).
    b1_bound = 1.0 / jnp.sqrt(jnp.float32(state_size))
    b2_bound = 1.0 / jnp.sqrt(jnp.float32(fc1_units))
    b1 = jax.random.uniform(k3, (1, fc1_units), jnp.float32, -b1_bound, b1_bound)
    b2 = jax.random.uniform(k4, (1, action_size), jnp.float32, -b2_bound, b2_bound)
    return w1, b1, w2, b2


def qnetwork_ref(x, w1, b1, w2, b2):
    """Pure-JAX reference for correctness checking."""
    h = x @ w1 + b1
    h = jnp.where(h > 0, h, 0.01 * h)
    return h @ w2 + b2


if __name__ == "__main__":
    key = jax.random.PRNGKey(0)
    state_size, action_size = 16, 4

    kp, kx_small, kx_big = jax.random.split(key, 3)
    w1, b1, w2, b2 = init_qnetwork_params(kp, state_size, action_size)
    params = prepare_qnetwork_params(w1, b1, w2, b2)

    # Small Kuhn-poker-scale batch, forced through the Pallas kernel (single tile).
    x_small = jax.random.normal(kx_small, (8, state_size), jnp.float32)
    out_small = jax.block_until_ready(
        qnetwork_forward(x_small, params, min_pallas_batch=0))
    ref_small = qnetwork_ref(x_small, w1, b1, w2, b2)
    assert out_small.shape == (8, action_size)
    assert jnp.allclose(out_small, ref_small, atol=1e-5, rtol=1e-5)

    # Replay-buffer-scale, non-tile-multiple batch: pipelined 4-step grid + tail pad.
    x_big = jax.random.normal(kx_big, (1000, state_size), jnp.float32)
    out_big = jax.block_until_ready(
        qnetwork_forward(x_big, params, block_batch=256))
    ref_big = qnetwork_ref(x_big, w1, b1, w2, b2)
    assert out_big.shape == (1000, action_size)
    assert jnp.allclose(out_big, ref_big, atol=1e-5, rtol=1e-5)

    # Tiny-batch fallback path (plain jnp, default min_pallas_batch threshold).
    out_fb = jax.block_until_ready(qnetwork_forward(x_small, params))
    assert out_fb.shape == (8, action_size)
    assert jnp.allclose(out_fb, ref_small, atol=1e-5, rtol=1e-5)

    print("KERNEL_OK")
</pallas_src>

<mosaic_0001>
module attributes {stable_mosaic.version = 11 : i64} {
  func.func @qnetwork_kernel(%arg0: i32, %arg1: memref<8x16xf32, #tpu.memory_space<vmem>>, %arg2: memref<16x128xf32, #tpu.memory_space<vmem>>, %arg3: memref<1x128xf32, #tpu.memory_space<vmem>>, %arg4: memref<128x128xf32, #tpu.memory_space<vmem>>, %arg5: memref<1x8xf32, #tpu.memory_space<vmem>>, %arg6: memref<8x8xf32, #tpu.memory_space<vmem>>) attributes {dimension_semantics = [#tpu.dimension_semantics<parallel>], iteration_bounds = array<i64: 1>, scalar_prefetch = 0 : i64, scratch_operands = 0 : i64, tpu.core_type = #tpu.core_type<tc>, window_params = [{transform_indices = @transform_0, window_bounds = array<i64: 8, 16>}, {pipeline_mode = #tpu.pipeline_mode<synchronous>, transform_indices = @transform_1, window_bounds = array<i64: 16, 128>}, {pipeline_mode = #tpu.pipeline_mode<synchronous>, transform_indices = @transform_2, window_bounds = array<i64: 1, 128>}, {pipeline_mode = #tpu.pipeline_mode<synchronous>, transform_indices = @transform_3, window_bounds = array<i64: 128, 128>}, {pipeline_mode = #tpu.pipeline_mode<synchronous>, transform_indices = @transform_4, window_bounds = array<i64: 1, 8>}, {transform_indices = @transform_5, window_bounds = array<i64: 8, 8>}]} {
    %c0 = arith.constant 0 : index
    %c0_0 = arith.constant 0 : index
    %0 = vector.load %arg1[%c0, %c0_0] : memref<8x16xf32, #tpu.memory_space<vmem>>, vector<8x16xf32>
    %c0_1 = arith.constant 0 : index
    %c0_2 = arith.constant 0 : index
    %1 = vector.load %arg2[%c0_1, %c0_2] : memref<16x128xf32, #tpu.memory_space<vmem>>, vector<16x128xf32>
    %cst = arith.constant dense<0.000000e+00> : vector<8x128xf32>
    %2 = tpu.matmul %0, %1, %cst {dimension_numbers = #tpu.dot_dimension_numbers<[1], [0], [0], [1], [0, 0, 1, 1], [], []>} : vector<8x16xf32>, vector<16x128xf32>, vector<8x128xf32> -> vector<8x128xf32>
    %c0_3 = arith.constant 0 : index
    %c0_4 = arith.constant 0 : index
    %3 = vector.load %arg3[%c0_3, %c0_4] : memref<1x128xf32, #tpu.memory_space<vmem>>, vector<1x128xf32>
    %4 = vector.broadcast %3 : vector<1x128xf32> to vector<8x128xf32>
    %5 = arith.addf %2, %4 : vector<8x128xf32>
    %cst_5 = arith.constant 0.00999999977 : f32
    %6 = vector.broadcast %cst_5 : f32 to vector<8x128xf32>
    %7 = arith.mulf %6, %5 : vector<8x128xf32>
    %8 = arith.maximumf %5, %7 : vector<8x128xf32>
    %c0_6 = arith.constant 0 : index
    %c0_7 = arith.constant 0 : index
    %9 = vector.load %arg4[%c0_6, %c0_7] : memref<128x128xf32, #tpu.memory_space<vmem>>, vector<128x128xf32>
    %cst_8 = arith.constant dense<0.000000e+00> : vector<8x128xf32>
    %10 = tpu.matmul %8, %9, %cst_8 {dimension_numbers = #tpu.dot_dimension_numbers<[1], [0], [0], [1], [0, 0, 1, 1], [], []>} : vector<8x128xf32>, vector<128x128xf32>, vector<8x128xf32> -> vector<8x128xf32>
    %11 = vector.extract_strided_slice %10 {offsets = [0, 0], sizes = [8, 8], strides = [1, 1]} : vector<8x128xf32> to vector<8x8xf32>
    %c0_9 = arith.constant 0 : index
    %c0_10 = arith.constant 0 : index
    %12 = vector.load %arg5[%c0_9, %c0_10] : memref<1x8xf32, #tpu.memory_space<vmem>>, vector<1x8xf32>
    %13 = vector.broadcast %12 : vector<1x8xf32> to vector<8x8xf32>
    %14 = arith.addf %11, %13 : vector<8x8xf32>
    %c0_11 = arith.constant 0 : index
    %c0_12 = arith.constant 0 : index
    %15 = vector.load %arg6[%c0_11, %c0_12] : memref<8x8xf32, #tpu.memory_space<vmem>>, vector<8x8xf32>
    tpu.vector_store %arg6[%c0_11, %c0_12], %14 {strides = array<i32>} : memref<8x8xf32, #tpu.memory_space<vmem>>, vector<8x8xf32>,
    return
  }
  func.func @transform_0(%arg0: i32) -> (i32, i32) {
    %c0_i32 = arith.constant 0 : i32
    %c0_i32_0 = arith.constant 0 : i32
    return %arg0, %c0_i32 : i32, i32
  }
  func.func @transform_1(%arg0: i32) -> (i32, i32) {
    %c0_i32 = arith.constant 0 : i32
    %c0_i32_0 = arith.constant 0 : i32
    %c0_i32_1 = arith.constant 0 : i32
    return %c0_i32, %c0_i32_0 : i32, i32
  }
  func.func @transform_2(%arg0: i32) -> (i32, i32) {
    %c0_i32 = arith.constant 0 : i32
    %c0_i32_0 = arith.constant 0 : i32
    %c0_i32_1 = arith.constant 0 : i32
    return %c0_i32, %c0_i32_0 : i32, i32
  }
  func.func @transform_3(%arg0: i32) -> (i32, i32) {
    %c0_i32 = arith.constant 0 : i32
    %c0_i32_0 = arith.constant 0 : i32
    %c0_i32_1 = arith.constant 0 : i32
    return %c0_i32, %c0_i32_0 : i32, i32
  }
  func.func @transform_4(%arg0: i32) -> (i32, i32) {
    %c0_i32 = arith.constant 0 : i32
    %c0_i32_0 = arith.constant 0 : i32
    %c0_i32_1 = arith.constant 0 : i32
    return %c0_i32, %c0_i32_0 : i32, i32
  }
  func.func @transform_5(%arg0: i32) -> (i32, i32) {
    %c0_i32 = arith.constant 0 : i32
    %c0_i32_0 = arith.constant 0 : i32
    return %arg0, %c0_i32 : i32, i32
  }
}

</mosaic_0001>

<llo_original>
// kernel: tpu_custom_call.1
$region0: #{tpu_custom_call.1}
  #allocation0 [shape = 'u32[]', space=smem, size = 0x4, offset = 0x4, fixed_abs, tag = 'smem constant byte address 0x4 - core index']
  #allocation1 [shape = 'u32[144,128]{1,0:T(1,128)}', space=vmem, size = 0x12000, scoped, tag = 'internal scratch']
  %s0 = inlined_call_operand.hbm [shape: f32[8,16], index: 0, kind: input, shape index: {}]
  %s1 = inlined_call_operand.hbm [shape: f32[16,128], index: 1, kind: input, shape index: {}]
  %s2 = inlined_call_operand.vmem [shape: f32[1,128], index: 2, kind: input, shape index: {}]
  %s3 = inlined_call_operand.hbm [shape: f32[128,128], index: 3, kind: input, shape index: {}]
  %s4 = inlined_call_operand.vmem [shape: f32[1,8], index: 4, kind: input, shape index: {}]
  %s5 = inlined_call_operand.hbm [shape: f32[8,8], index: 5, kind: output, shape index: {}]
  %s6 = sld [smem:[#allocation0]]
  $region42: #{tpu_custom_call.1} parent=0
    _
  %s8 = ssub.s32 1, %s6
  %s9 = scalar_select 0, %s8, %s6
  $region1: #{tpu_custom_call.1} parent=0
    #allocation2 [shape = 'u8[4096]{0}', space=vmem, size = 0x1000, scoped, tag = 'input window, operand 0, single buffered']
    #allocation3 [shape = 's32[1]{0}', space=sflag, size = 0x4, scoped, tag = 'scoped memory for tpu_custom_call.1']
    #allocation4 [shape = 's32[1]{0}', space=sflag, size = 0x4, scoped, tag = 'scoped memory for tpu_custom_call.1']
    #allocation5 [shape = 'u8[8192]{0}', space=vmem, size = 0x2000, scoped, tag = 'input window, operand 1, single buffered']
    #allocation6 [shape = 's32[1]{0}', space=sflag, size = 0x4, scoped, tag = 'scoped memory for tpu_custom_call.1']
    #allocation7 [shape = 'u8[65536]{0}', space=vmem, size = 0x10000, scoped, tag = 'input window, operand 3, single buffered']
    #allocation8 [shape = 'u8[4096]{0}', space=vmem, size = 0x1000, scoped, tag = 'output window, operand 0, single buffered']
    %10 = vsyncpa [#allocation3], 0
    %11 = vsyncpa [#allocation6], 0
    %12 = vsyncpa [#allocation4], 0
    // Predicated region
    $region2: #{tpu_custom_call.1} parent=1 // pred_check
      _
    $region3: #{tpu_custom_call.1} parent=1 // pred_check_branch
      %14 = sbr.rel (0) target = $region5
    $region4: #{tpu_custom_call.1} parent=1 // pred_region
      %s16 = ssub.s32 128, 128
      %17 = vsyncadd [#allocation3], %s16
      %s19 = sshll.u32 [#allocation2], 4
      %s20 = int_to_ptr.vmem [resolvable:$true] %s19
      %22 = dma.hbm_to_vmem [thread:$0]  %s0, 128, %s20, [#allocation3]
    $region5: #{tpu_custom_call.1} parent=1 // pred_fallthru
      _
    // Predicated region
    $region6: #{tpu_custom_call.1} parent=1 // pred_check
      _
    $region7: #{tpu_custom_call.1} parent=1 // pred_check_branch
      %24 = sbr.rel (0) target = $region9
    $region8: #{tpu_custom_call.1} parent=1 // pred_region
      %s26 = ssub.s32 256, 256
      %27 = vsyncadd [#allocation6], %s26
      %s28 = sshll.u32 [#allocation5], 4
      %s29 = int_to_ptr.vmem [resolvable:$true] %s28
      %34 = dma.hbm_to_vmem [thread:$0]  %s1, 256, %s29, [#allocation6], 128, 128, 8
    $region9: #{tpu_custom_call.1} parent=1 // pred_fallthru
      _
    // Predicated region
    $region10: #{tpu_custom_call.1} parent=1 // pred_check
      _
    $region11: #{tpu_custom_call.1} parent=1 // pred_check_branch
      %36 = sbr.rel (0) target = $region13
    $region12: #{tpu_custom_call.1} parent=1 // pred_region
      _
    $region13: #{tpu_custom_call.1} parent=1 // pred_fallthru
      _
    // Predicated region
    $region14: #{tpu_custom_call.1} parent=1 // pred_check
      _
    $region15: #{tpu_custom_call.1} parent=1 // pred_check_branch
      %38 = sbr.rel (0) target = $region17
    $region16: #{tpu_custom_call.1} parent=1 // pred_region
      %s40 = ssub.s32 2048, 2048
      %41 = vsyncadd [#allocation6], %s40
      %s42 = sshll.u32 [#allocation7], 4
      %s43 = int_to_ptr.vmem [resolvable:$true] %s42
      %48 = dma.hbm_to_vmem [thread:$0]  %s3, 2048, %s43, [#allocation6], 128, 128, 8
    $region17: #{tpu_custom_call.1} parent=1 // pred_fallthru
      _
    // Predicated region
    $region18: #{tpu_custom_call.1} parent=1 // pred_check
      _
    $region19: #{tpu_custom_call.1} parent=1 // pred_check_branch
      %50 = sbr.rel (0) target = $region21
    $region20: #{tpu_custom_call.1} parent=1 // pred_region
      _
    $region21: #{tpu_custom_call.1} parent=1 // pred_fallthru
      _
    // Predicated region
    $region22: #{tpu_custom_call.1} parent=1 // pred_check
      _
    $region23: #{tpu_custom_call.1} parent=1 // pred_check_branch
      %52 = sbr.rel (0) target = $region25
    $region24: #{tpu_custom_call.1} parent=1 // pred_region
      %53 = dma.done [#allocation3], 128
    $region25: #{tpu_custom_call.1} parent=1 // pred_fallthru
      _
    // Predicated region
    $region26: #{tpu_custom_call.1} parent=1 // pred_check
      _
    $region27: #{tpu_custom_call.1} parent=1 // pred_check_branch
      %55 = sbr.rel (0) target = $region29
    $region28: #{tpu_custom_call.1} parent=1 // pred_region
      %56 = dma.done [#allocation6], 256
    $region29: #{tpu_custom_call.1} parent=1 // pred_fallthru
      _
    // Predicated region
    $region30: #{tpu_custom_call.1} parent=1 // pred_check
      _
    $region31: #{tpu_custom_call.1} parent=1 // pred_check_branch
      %58 = sbr.rel (0) target = $region33
    $region32: #{tpu_custom_call.1} parent=1 // pred_region
      %59 = dma.done [#allocation6], 2048
    $region33: #{tpu_custom_call.1} parent=1 // pred_fallthru
      _
    %v60 = vld [vmem:[#allocation2] sm:$0xff]
    %v61 = vld [vmem:[#allocation5] sm:$0xff]
    %v62 = vld [vmem:[#allocation5 + $0x8] sm:$0xff]
    %v63 = vld [vmem:[%s2] sm:$0x1]
    %v65 = vlaneseq
    %v66 = vshrl.u32 %v65, 7
    %v67 = vsub.s32 0, %v66
    %v68 = vrot.slane %v63, %v67
    %vm70 = vcmask 130048
    %v72 = vsel %vm70, %v60, 0
    %74 = vmatprep.subr.mxu0 0.0
    %75 = vmatpush1.msra.mxu0 %v61
    %76 = vmatprep.subr.mxu0 0.0
    %77 = vmatpush1.msra.mxu0 %v62
    %78 = vmatprep.subr.mxu0 0.0
    %79 = vmatpush1.msra.mxu0 0.0
    %80 = vmatprep.subr.mxu0 0.0
    %81 = vmatpush1.msra.mxu0 0.0
    %82 = vmatprep.subr.mxu0 0.0
    %83 = vmatpush1.msra.mxu0 0.0
    %84 = vmatprep.subr.mxu0 0.0
    %85 = vmatpush1.msra.mxu0 0.0
    %86 = vmatprep.subr.mxu0 0.0
    %87 = vmatpush1.msra.mxu0 0.0
    %88 = vmatprep.subr.mxu0 0.0
    %89 = vmatpush1.msra.mxu0 0.0
    %90 = vmatprep.subr.mxu0 0.0
    %91 = vmatpush1.msra.mxu0 0.0
    %92 = vmatprep.subr.mxu0 0.0
    %93 = vmatpush1.msra.mxu0 0.0
    %94 = vmatprep.subr.mxu0 0.0
    %95 = vmatpush1.msra.mxu0 0.0
    %96 = vmatprep.subr.mxu0 0.0
    %97 = vmatpush1.msra.mxu0 0.0
    %98 = vmatprep.subr.mxu0 0.0
    %99 = vmatpush1.msra.mxu0 0.0
    %100 = vmatprep.subr.mxu0 0.0
    %101 = vmatpush1.msra.mxu0 0.0
    %102 = vmatprep.subr.mxu0 0.0
    %103 = vmatpush1.msra.mxu0 0.0
    %104 = vmatprep.subr.mxu0 0.0
    %105 = vmatpush1.msra.mxu0 0.0
    %106 = vmatprep.subr.mxu0 0.0
    %107 = vmatpush1.msra.mxu0 0.0
    %108 = vmatprep.subr.mxu0 0.0
    %109 = vmatpush1.msra.mxu0 0.0
    %110 = vmatprep.subr.mxu0 0.0
    %111 = vmatpush1.msra.mxu0 0.0
    %112 = vmatprep.subr.mxu0 0.0
    %113 = vmatpush1.msra.mxu0 0.0
    %114 = vmatprep.subr.mxu0 0.0
    %115 = vmatpush1.msra.mxu0 0.0
    %116 = vmatprep.subr.mxu0 0.0
    %117 = vmatpush1.msra.mxu0 0.0
    %118 = vmatprep.subr.mxu0 0.0
    %119 = vmatpush1.msra.mxu0 0.0
    %120 = vmatprep.subr.mxu0 0.0
    %121 = vmatpush1.msra.mxu0 0.0
    %122 = vmatprep.subr.mxu0 0.0
    %123 = vmatpush1.msra.mxu0 0.0
    %124 = vmatprep.subr.mxu0 0.0
    %125 = vmatpush1.msra.mxu0 0.0
    %126 = vmatprep.subr.mxu0 0.0
    %127 = vmatpush1.msra.mxu0 0.0
    %128 = vmatprep.subr.mxu0 0.0
    %129 = vmatpush1.msra.mxu0 0.0
    %130 = vmatprep.subr.mxu0 0.0
    %131 = vmatpush1.msra.mxu0 0.0
    %132 = vmatprep.subr.mxu0 0.0
    %133 = vmatpush1.msra.mxu0 0.0
    %134 = vmatprep.subr.mxu0 0.0
    %135 = vmatpush1.msra.mxu0 0.0
    %136 = vmatprep.subr.mxu0 0.0
    %137 = vmatpush1.msra.mxu0 0.0
    %138 = vmatprep.mubr.f32.mxu0 0.0
    %139 = vmatmul.mubr.f32.gmra.mrb[0].mxu0 %v72
    %v140 = vpop.f32.mrb[0].mxu0
    %v141 = vadd.f32 %v68, %v140
    %v142 = vpop.f32.mrb[0].mxu0
    %143 = vdwg.mxu0
    %v144 = vmul.f32 %v141, 0.01
    %v145 = vmax.f32 %v141, %v144
    %v146 = vld [vmem:[#allocation7] sm:$0xff]
    %v147 = vld [vmem:[#allocation7 + $0x8] sm:$0xff]
    %v148 = vld [vmem:[#allocation7 + $0x10] sm:$0xff]
    %v149 = vld [vmem:[#allocation7 + $0x18] sm:$0xff]
    %v150 = vld [vmem:[#allocation7 + $0x20] sm:$0xff]
    %v151 = vld [vmem:[#allocation7 + $0x28] sm:$0xff]
    %v152 = vld [vmem:[#allocation7 + $0x30] sm:$0xff]
    %v153 = vld [vmem:[#allocation7 + $0x38] sm:$0xff]
    %v154 = vld [vmem:[#allocation7 + $0x40] sm:$0xff]
    %v155 = vld [vmem:[#allocation7 + $0x48] sm:$0xff]
    %v156 = vld [vmem:[#allocation7 + $0x50] sm:$0xff]
    %v157 = vld [vmem:[#allocation7 + $0x58] sm:$0xff]
    %v158 = vld [vmem:[#allocation7 + $0x60] sm:$0xff]
    %v159 = vld [vmem:[#allocation7 + $0x68] sm:$0xff]
    %v160 = vld [vmem:[#allocation7 + $0x70] sm:$0xff]
    %v161 = vld [vmem:[#allocation7 + $0x78] sm:$0xff]
    %162 = vmatprep.subr.mxu0 0.0
    %163 = vmatpush1.msra.mxu0 %v146
    %164 = vmatprep.subr.mxu0 0.0
    %165 = vmatpush1.msra.mxu0 %v147
    %166 = vmatprep.subr.mxu0 0.0
    %167 = vmatpush1.msra.mxu0 %v148
    %168 = vmatprep.subr.mxu0 0.0
    %169 = vmatpush1.msra.mxu0 %v149
    %170 = vmatprep.subr.mxu0 0.0
    %171 = vmatpush1.msra.mxu0 %v150
    %172 = vmatprep.subr.mxu0 0.0
    %173 = vmatpush1.msra.mxu0 %v151
    %174 = vmatprep.subr.mxu0 0.0
    %175 = vmatpush1.msra.mxu0 %v152
    %176 = vmatprep.subr.mxu0 0.0
    %177 = vmatpush1.msra.mxu0 %v153
    %178 = vmatprep.subr.mxu0 0.0
    %179 = vmatpush1.msra.mxu0 %v154
    %180 = vmatprep.subr.mxu0 0.0
    %181 = vmatpush1.msra.mxu0 %v155
    %182 = vmatprep.subr.mxu0 0.0
    %183 = vmatpush1.msra.mxu0 %v156
    %184 = vmatprep.subr.mxu0 0.0
    %185 = vmatpush1.msra.mxu0 %v157
    %186 = vmatprep.subr.mxu0 0.0
    %187 = vmatpush1.msra.mxu0 %v158
    %188 = vmatprep.subr.mxu0 0.0
    %189 = vmatpush1.msra.mxu0 %v159
    %190 = vmatprep.subr.mxu0 0.0
    %191 = vmatpush1.msra.mxu0 %v160
    %192 = vmatprep.subr.mxu0 0.0
    %193 = vmatpush1.msra.mxu0 %v161
    %194 = vmatprep.subr.mxu0 0.0
    %195 = vmatpush1.msra.mxu0 0.0
    %196 = vmatprep.subr.mxu0 0.0
    %197 = vmatpush1.msra.mxu0 0.0
    %198 = vmatprep.subr.mxu0 0.0
    %199 = vmatpush1.msra.mxu0 0.0
    %200 = vmatprep.subr.mxu0 0.0
    %201 = vmatpush1.msra.mxu0 0.0
    %202 = vmatprep.subr.mxu0 0.0
    %203 = vmatpush1.msra.mxu0 0.0
    %204 = vmatprep.subr.mxu0 0.0
    %205 = vmatpush1.msra.mxu0 0.0
    %206 = vmatprep.subr.mxu0 0.0
    %207 = vmatpush1.msra.mxu0 0.0
    %208 = vmatprep.subr.mxu0 0.0
    %209 = vmatpush1.msra.mxu0 0.0
    %210 = vmatprep.subr.mxu0 0.0
    %211 = vmatpush1.msra.mxu0 0.0
    %212 = vmatprep.subr.mxu0 0.0
    %213 = vmatpush1.msra.mxu0 0.0
    %214 = vmatprep.subr.mxu0 0.0
    %215 = vmatpush1.msra.mxu0 0.0
    %216 = vmatprep.subr.mxu0 0.0
    %217 = vmatpush1.msra.mxu0 0.0
    %218 = vmatprep.subr.mxu0 0.0
    %219 = vmatpush1.msra.mxu0 0.0
    %220 = vmatprep.subr.mxu0 0.0
    %221 = vmatpush1.msra.mxu0 0.0
    %222 = vmatprep.subr.mxu0 0.0
    %223 = vmatpush1.msra.mxu0 0.0
    %224 = vmatprep.subr.mxu0 0.0
    %225 = vmatpush1.msra.mxu0 0.0
    %226 = vmatprep.mubr.f32.mxu0 0.0
    %227 = vmatmul.mubr.f32.gmra.mrb[0].mxu0 %v145
    %v228 = vpop.f32.mrb[0].mxu0
    %v229 = vadd.f32 0.0, %v228
    %v230 = vpop.f32.mrb[0].mxu0
    %231 = vdwg.mxu0
    %v232 = vld [vmem:[%s4] sm:$0x1]
    %v234 = vlaneseq
    %v235 = vshrl.u32 %v234, 7
    %v236 = vsub.s32 0, %v235
    %v237 = vrot.slane %v232, %v236
    %v239 = vadd.f32 %v229, %v237
    %vm240 = vcmask 64512
    %241 = vst.msk [vmem:[#allocation8] sm:$0xff] %vm240, %v239
    // Predicated region
    $region34: #{tpu_custom_call.1} parent=1 // pred_check
      _
    $region35: #{tpu_custom_call.1} parent=1 // pred_check_branch
      %243 = sbr.rel (0) target = $region37
    $region36: #{tpu_custom_call.1} parent=1 // pred_region
      %s245 = ssub.s32 128, 128
      %246 = vsyncadd [#allocation4], %s245
      %s248 = sshll.u32 [#allocation8], 4
      %s249 = int_to_ptr.vmem [resolvable:$true] %s248
      %251 = dma.vmem_to_hbm [thread:$0]  %s249, 128, %s5, [#allocation4]
    $region37: #{tpu_custom_call.1} parent=1 // pred_fallthru
      _
    // Predicated region
    $region38: #{tpu_custom_call.1} parent=1 // pred_check
      _
    $region39: #{tpu_custom_call.1} parent=1 // pred_check_branch
      %253 = sbr.rel (0) target = $region41
    $region40: #{tpu_custom_call.1} parent=1 // pred_region
      %254 = dma.done [#allocation4], 128
    $region41: #{tpu_custom_call.1} parent=1 // pred_fallthru
      _
    %255 = vsyncpa [#allocation3], 1
    %256 = vsyncpa [#allocation6], 1
    %257 = vsyncpa [#allocation4], 1

</llo_original>
